<compile_context>
chip_gen: v7x
topology: tpu7x:2x2x1
jax: 0.10.0
libtpu: 0.0.40
codegen_flags: <defaults>
</compile_context>

<pallas_src>
import functools

import jax
import jax.numpy as jnp
from jax.experimental import pallas as pl
from jax.experimental.pallas import tpu as pltpu


def _prenorm_kernel(x_ref, g_ref, w_ref, b_ref, o_ref, *, eps):
    # x_ref: (1, C, TL)   g_ref: (C, 1)   w_ref: (Cout, C)   b_ref: (Cout, 1)
    x = x_ref[0].astype(jnp.float32)                          # (C, TL)

    # LayerNorm over channels (sublane reduction), biased variance, f32 math.
    mean = jnp.mean(x, axis=0, keepdims=True)                 # (1, TL)
    xc = x - mean                                             # center once
    var = jnp.mean(xc * xc, axis=0, keepdims=True)            # (1, TL)
    x_norm = xc * jax.lax.rsqrt(var + jnp.float32(eps)) * g_ref[...]

    # fn = pointwise Conv1d (1x1): channel matmul on the MXU, f32 accumulate.
    y = jnp.dot(
        w_ref[...],
        x_norm.astype(w_ref.dtype),
        preferred_element_type=jnp.float32,
    )
    o_ref[0] = (y + b_ref[...]).astype(o_ref.dtype)


def _pick_tl(L, C, Cout):
    """Largest 128-multiple length tile whose double-buffered in+out tiles
    stay under a conservative VMEM budget (safe on v7x's 64 MiB VMEM)."""
    if L % 128 != 0:
        return L  # small / odd L: full-length block (block == full dim is legal)
    budget = 24 << 20
    tl = 128
    for cand in (256, 512, 1024, 2048):
        if L % cand == 0 and 2 * (C + Cout) * cand * 4 <= budget:
            tl = cand
    return tl


def prenorm_pointwise_conv(x, g, w, b, *, matmul_dtype=jnp.bfloat16):
    """x: (B, C, L); g: (1, C, 1); w: (Cout, C, 1); b: (Cout,)."""
    B, C, L = x.shape
    Cout = w.shape[0]
    eps = 1e-5 if x.dtype == jnp.float32 else 1e-3

    g2 = g.reshape(C, 1).astype(jnp.float32)
    w2 = w.reshape(Cout, C).astype(matmul_dtype)   # resident, cast once
    b2 = b.reshape(Cout, 1).astype(jnp.float32)

    TL = _pick_tl(L, C, Cout)
    n_l = L // TL

    # VMEM: double-buffered x/out tiles + resident params + slack.
    need = (
        2 * (C + Cout) * TL * x.dtype.itemsize
        + (C + Cout) * 4
        + Cout * C * jnp.dtype(matmul_dtype).itemsize
        + (4 << 20)
    )
    vmem_limit = int(min(max(need, 16 << 20), 56 << 20))

    kernel = functools.partial(_prenorm_kernel, eps=eps)

    return pl.pallas_call(
        kernel,
        out_shape=jax.ShapeDtypeStruct((B, Cout, L), x.dtype),
        grid=(B, n_l),
        in_specs=[
            pl.BlockSpec((1, C, TL), lambda bi, li: (bi, 0, li)),
            pl.BlockSpec((C, 1), lambda bi, li: (0, 0)),
            pl.BlockSpec((Cout, C), lambda bi, li: (0, 0)),
            pl.BlockSpec((Cout, 1), lambda bi, li: (0, 0)),
        ],
        out_specs=pl.BlockSpec((1, Cout, TL), lambda bi, li: (bi, 0, li)),
        compiler_params=pltpu.CompilerParams(
            dimension_semantics=("parallel", "parallel"),
            vmem_limit_bytes=vmem_limit,
        ),
    )(x, g2, w2, b2)


def _reference(x, g, w, b):
    """Pure-JAX reference matching the PyTorch forward (f32)."""
    eps = 1e-5
    mean = jnp.mean(x, axis=1, keepdims=True)
    var = jnp.var(x, axis=1, keepdims=True)           # ddof=0 == unbiased=False
    xn = (x - mean) * jax.lax.rsqrt(var + eps) * g
    y = jnp.einsum("oc,bcl->bol", w[..., 0], xn) + b[None, :, None]
    return y


if __name__ == "__main__":
    B, C, L = 2, 8, 16
    Cout = 8

    key = jax.random.PRNGKey(0)
    kx, kg, kw, kb = jax.random.split(key, 4)

    x = jax.random.normal(kx, (B, C, L), dtype=jnp.float32)
    g = jnp.ones((1, C, 1), jnp.float32) + 0.1 * jax.random.normal(kg, (1, C, 1))
    w = 0.2 * jax.random.normal(kw, (Cout, C, 1), dtype=jnp.float32)
    b = 0.1 * jax.random.normal(kb, (Cout,), dtype=jnp.float32)

    ref = _reference(x, g, w, b)

    # Exact-semantics path (f32 matmul): tight tolerance.
    out_f32 = jax.block_until_ready(
        prenorm_pointwise_conv(x, g, w, b, matmul_dtype=jnp.float32)
    )
    assert out_f32.shape == (B, Cout, L)
    assert jnp.allclose(out_f32, ref, atol=1e-5, rtol=1e-5), (
        f"f32 max err {jnp.max(jnp.abs(out_f32 - ref))}"
    )

    # Default perf path (bf16 MXU operands, f32 accumulation): looser tolerance.
    out_bf16 = jax.block_until_ready(prenorm_pointwise_conv(x, g, w, b))
    assert out_bf16.shape == (B, Cout, L)
    assert jnp.allclose(out_bf16, ref, atol=3e-2, rtol=3e-2), (
        f"bf16 max err {jnp.max(jnp.abs(out_bf16 - ref))}"
    )

    print("KERNEL_OK")
</pallas_src>

<mosaic_0001>
module attributes {stable_mosaic.version = 11 : i64} {
  func.func @_prenorm_kernel(%arg0: i32, %arg1: i32, %arg2: memref<1x8x16xf32, #tpu.memory_space<vmem>>, %arg3: memref<8x1xf32, #tpu.memory_space<vmem>>, %arg4: memref<8x8xf32, #tpu.memory_space<vmem>>, %arg5: memref<8x1xf32, #tpu.memory_space<vmem>>, %arg6: memref<1x8x16xf32, #tpu.memory_space<vmem>>) attributes {dimension_semantics = [#tpu.dimension_semantics<parallel>, #tpu.dimension_semantics<parallel>], iteration_bounds = array<i64: 2, 1>, scalar_prefetch = 0 : i64, scratch_operands = 0 : i64, tpu.core_type = #tpu.core_type<tc>, window_params = [{transform_indices = @transform_0, window_bounds = array<i64: 1, 8, 16>}, {pipeline_mode = #tpu.pipeline_mode<synchronous>, transform_indices = @transform_1, window_bounds = array<i64: 8, 1>}, {pipeline_mode = #tpu.pipeline_mode<synchronous>, transform_indices = @transform_2, window_bounds = array<i64: 8, 8>}, {pipeline_mode = #tpu.pipeline_mode<synchronous>, transform_indices = @transform_3, window_bounds = array<i64: 8, 1>}, {transform_indices = @transform_4, window_bounds = array<i64: 1, 8, 16>}]} {
    %c0 = arith.constant 0 : index
    %c0_0 = arith.constant 0 : index
    %c0_1 = arith.constant 0 : index
    %0 = vector.load %arg2[%c0, %c0_0, %c0_1] : memref<1x8x16xf32, #tpu.memory_space<vmem>>, vector<1x8x16xf32>
    %1 = vector.shape_cast %0 : vector<1x8x16xf32> to vector<8x16xf32>
    %cst = arith.constant dense<0.000000e+00> : vector<16xf32>
    %2 = vector.multi_reduction <add>, %1, %cst [0] : vector<8x16xf32> to vector<16xf32>
    %3 = vector.shape_cast %2 : vector<16xf32> to vector<1x16xf32>
    %cst_2 = arith.constant 8.000000e+00 : f32
    %4 = vector.broadcast %cst_2 : f32 to vector<1x16xf32>
    %5 = arith.divf %3, %4 : vector<1x16xf32>
    %6 = vector.broadcast %5 : vector<1x16xf32> to vector<8x16xf32>
    %7 = arith.subf %1, %6 : vector<8x16xf32>
    %8 = arith.mulf %7, %7 : vector<8x16xf32>
    %cst_3 = arith.constant dense<0.000000e+00> : vector<16xf32>
    %9 = vector.multi_reduction <add>, %8, %cst_3 [0] : vector<8x16xf32> to vector<16xf32>
    %10 = vector.shape_cast %9 : vector<16xf32> to vector<1x16xf32>
    %cst_4 = arith.constant 8.000000e+00 : f32
    %11 = vector.broadcast %cst_4 : f32 to vector<1x16xf32>
    %12 = arith.divf %10, %11 : vector<1x16xf32>
    %cst_5 = arith.constant 9.99999974E-6 : f32
    %13 = vector.broadcast %cst_5 : f32 to vector<1x16xf32>
    %14 = arith.addf %12, %13 : vector<1x16xf32>
    %15 = math.rsqrt %14 : vector<1x16xf32>
    %16 = vector.broadcast %15 : vector<1x16xf32> to vector<8x16xf32>
    %17 = arith.mulf %7, %16 : vector<8x16xf32>
    %c0_6 = arith.constant 0 : index
    %c0_7 = arith.constant 0 : index
    %18 = vector.load %arg3[%c0_6, %c0_7] : memref<8x1xf32, #tpu.memory_space<vmem>>, vector<8x1xf32>
    %19 = vector.broadcast %18 : vector<8x1xf32> to vector<8x16xf32>
    %20 = arith.mulf %17, %19 : vector<8x16xf32>
    %c0_8 = arith.constant 0 : index
    %c0_9 = arith.constant 0 : index
    %21 = vector.load %arg4[%c0_8, %c0_9] : memref<8x8xf32, #tpu.memory_space<vmem>>, vector<8x8xf32>
    %cst_10 = arith.constant dense<0.000000e+00> : vector<8x16xf32>
    %22 = tpu.matmul %21, %20, %cst_10 {dimension_numbers = #tpu.dot_dimension_numbers<[1], [0], [0], [1], [0, 0, 1, 1], [], []>} : vector<8x8xf32>, vector<8x16xf32>, vector<8x16xf32> -> vector<8x16xf32>
    %c0_11 = arith.constant 0 : index
    %c0_12 = arith.constant 0 : index
    %23 = vector.load %arg5[%c0_11, %c0_12] : memref<8x1xf32, #tpu.memory_space<vmem>>, vector<8x1xf32>
    %24 = vector.broadcast %23 : vector<8x1xf32> to vector<8x16xf32>
    %25 = arith.addf %22, %24 : vector<8x16xf32>
    %c0_13 = arith.constant 0 : index
    %c0_14 = arith.constant 0 : index
    %c0_15 = arith.constant 0 : index
    %26 = vector.load %arg6[%c0_13, %c0_14, %c0_15] : memref<1x8x16xf32, #tpu.memory_space<vmem>>, vector<1x8x16xf32>
    %27 = vector.shape_cast %26 : vector<1x8x16xf32> to vector<8x16xf32>
    %28 = vector.shape_cast %25 : vector<8x16xf32> to vector<1x8x16xf32>
    tpu.vector_store %arg6[%c0_13, %c0_14, %c0_15], %28 {strides = array<i32>} : memref<1x8x16xf32, #tpu.memory_space<vmem>>, vector<1x8x16xf32>,
    return
  }
  func.func @transform_0(%arg0: i32, %arg1: i32) -> (i32, i32, i32) {
    %c0_i32 = arith.constant 0 : i32
    %c0_i32_0 = arith.constant 0 : i32
    return %arg0, %c0_i32, %arg1 : i32, i32, i32
  }
  func.func @transform_1(%arg0: i32, %arg1: i32) -> (i32, i32) {
    %c0_i32 = arith.constant 0 : i32
    %c0_i32_0 = arith.constant 0 : i32
    %c0_i32_1 = arith.constant 0 : i32
    return %c0_i32, %c0_i32_0 : i32, i32
  }
  func.func @transform_2(%arg0: i32, %arg1: i32) -> (i32, i32) {
    %c0_i32 = arith.constant 0 : i32
    %c0_i32_0 = arith.constant 0 : i32
    %c0_i32_1 = arith.constant 0 : i32
    return %c0_i32, %c0_i32_0 : i32, i32
  }
  func.func @transform_3(%arg0: i32, %arg1: i32) -> (i32, i32) {
    %c0_i32 = arith.constant 0 : i32
    %c0_i32_0 = arith.constant 0 : i32
    %c0_i32_1 = arith.constant 0 : i32
    return %c0_i32, %c0_i32_0 : i32, i32
  }
  func.func @transform_4(%arg0: i32, %arg1: i32) -> (i32, i32, i32) {
    %c0_i32 = arith.constant 0 : i32
    %c0_i32_0 = arith.constant 0 : i32
    return %arg0, %c0_i32, %arg1 : i32, i32, i32
  }
}

</mosaic_0001>

<llo_original>
// kernel: tpu_custom_call.1
$region0: #{tpu_custom_call.1}
  #allocation0 [shape = 'u32[]', space=smem, size = 0x4, offset = 0x4, fixed_abs, tag = 'smem constant byte address 0x4 - core index']
  #allocation1 [shape = 'u32[144,128]{1,0:T(1,128)}', space=vmem, size = 0x12000, scoped, tag = 'internal scratch']
  %s0 = inlined_call_operand.vmem [shape: f32[2,8,16], index: 0, kind: input, shape index: {}]
  %s1 = inlined_call_operand.vmem [shape: f32[8,1], index: 1, kind: input, shape index: {}]
  %s2 = inlined_call_operand.vmem [shape: f32[8,8], index: 2, kind: input, shape index: {}]
  %s3 = inlined_call_operand.vmem [shape: f32[8,1], index: 3, kind: input, shape index: {}]
  %s4 = inlined_call_operand.hbm [shape: f32[2,8,16], index: 4, kind: output, shape index: {}]
  %s5 = sld [smem:[#allocation0]]
  $region49: #{tpu_custom_call.1} parent=0
    _
  %s7 = ssub.s32 1, %s5
  %s8 = scalar_select 0, %s7, %s5
  $region1: #{tpu_custom_call.1} parent=0
    #allocation2 [shape = 'u8[8192]{0}', space=vmem, size = 0x2000, scoped, tag = 'output window, operand 0']
    #allocation3 [shape = 's32[2]{0}', space=sflag, size = 0x8, scoped, tag = 'scoped memory for tpu_custom_call.1']
    %9 = vsyncpa [#allocation3], 0
    %s10 = scalar_lea.sflag [#allocation3], 1
    %11 = vsyncpa %s10, 0
    loop: start=0, step=1, limit=4
    $region2: #{tpu_custom_call.1} parent=1 // loop_pre_header
      _
    $region3: #{tpu_custom_call.1} parent=1 // loop_header
      %s13 = sphi 0, %s17
      %p14 = scmp.ge.s32.totalorder %s13, 4
      %s20 = sphi 0, %s32
      %s21 = sphi 0, %s28
      %s22 = sphi 0, %s20
      %s23 = sphi 0, %s21
      %s24 = sphi 0, %s22
      %s25 = sphi 0, %s23
      %s37 = sphi 0, %s39
      %s40 = sphi 0, %s37
      %s41 = sphi 0, %s40
      %s57 = sphi 0, %s41
      %s61 = sphi 0, %s61
      %s63 = sphi 0, %s61
      %s64 = sphi 0, %s63
      %s78 = sphi 0, %s64
      %s82 = sphi 0, %s82
      %s84 = sphi 0, %s82
      %s85 = sphi 0, %s84
      %s99 = sphi 0, %s85
      %s103 = sphi 0, %s103
      %s105 = sphi 0, %s103
      %s106 = sphi 0, %s105
      %s120 = sphi 0, %s106
      %s128 = sphi 0, %s130
      %s131 = sphi 0, %s128
      %s132 = sphi 0, %s131
      %s148 = sphi 0, %s132
    $region4: #{tpu_custom_call.1} parent=1 // loop_header_branch
      %16 = sbr.rel (%p14) target = $region8
    $region5: #{tpu_custom_call.1} parent=1 // loop_body
      %s18 = ssub.s32 %s13, 1
      %s19 = ssub.s32 %s13, 2
      %s26 = sadd.s32 1, %s21
      %p27 = scmp.ge.s32.totalorder %s26, 1
      %s28 = scalar_select %p27, 0, %s26
      %s29 = sadd.s32 1, %s20
      %s30 = scalar_select %p27, %s29, %s20
      %p31 = scmp.ge.s32.totalorder %s30, 2
      %s32 = scalar_select %p31, 0, %s30
      %s33 = ssub.s32 %s20, %s32
      %s34 = ssub.s32 %s21, %s28
      %s35 = sor.u32 %s33, %s34
      %p36 = scmp.eq.s32.totalorder %s35, 0
      %s38 = sadd.s32 %s37, 1
      %s39 = scalar_select %p36, %s37, %s38
      %p42 = pneg %p36
      %p43 = scmp.eq.s32.totalorder %s13, 1
      %p44 = por %p42, %p43
      %p45 = scmp.ne.s32.totalorder %s37, %s40
      %p46 = scmp.eq.s32.totalorder %s13, 0
      %p47 = por %p45, %p46
      %p48 = scmp.ne.s32.totalorder %s37, %s40
      %p49 = scmp.eq.s32.totalorder %s18, 1
      %p50 = por %p48, %p49
      %p51 = scmp.ne.s32.totalorder %s40, %s41
      %p52 = scmp.eq.s32.totalorder %s18, 0
      %p53 = por %p51, %p52
      %p54 = scmp.ne.s32.totalorder %s40, %s41
      %p55 = scmp.eq.s32.totalorder %s19, 1
      %p56 = por %p54, %p55
      %p58 = scmp.ne.s32.totalorder %s41, %s57
      %p59 = scmp.eq.s32.totalorder %s19, 0
      %p60 = por %p58, %p59
      %s62 = sadd.s32 %s61, 1
      %p65 = scmp.eq.s32.totalorder %s13, 1
      %p66 = scmp.ne.s32.totalorder %s61, %s63
      %p67 = scmp.eq.s32.totalorder %s13, 0
      %p68 = por %p66, %p67
      %p69 = scmp.ne.s32.totalorder %s61, %s63
      %p70 = scmp.eq.s32.totalorder %s18, 1
      %p71 = por %p69, %p70
      %p72 = scmp.ne.s32.totalorder %s63, %s64
      %p73 = scmp.eq.s32.totalorder %s18, 0
      %p74 = por %p72, %p73
      %p75 = scmp.ne.s32.totalorder %s63, %s64
      %p76 = scmp.eq.s32.totalorder %s19, 1
      %p77 = por %p75, %p76
      %p79 = scmp.ne.s32.totalorder %s64, %s78
      %p80 = scmp.eq.s32.totalorder %s19, 0
      %p81 = por %p79, %p80
      %s83 = sadd.s32 %s82, 1
      %p86 = scmp.eq.s32.totalorder %s13, 1
      %p87 = scmp.ne.s32.totalorder %s82, %s84
      %p88 = scmp.eq.s32.totalorder %s13, 0
      %p89 = por %p87, %p88
      %p90 = scmp.ne.s32.totalorder %s82, %s84
      %p91 = scmp.eq.s32.totalorder %s18, 1
      %p92 = por %p90, %p91
      %p93 = scmp.ne.s32.totalorder %s84, %s85
      %p94 = scmp.eq.s32.totalorder %s18, 0
      %p95 = por %p93, %p94
      %p96 = scmp.ne.s32.totalorder %s84, %s85
      %p97 = scmp.eq.s32.totalorder %s19, 1
      %p98 = por %p96, %p97
      %p100 = scmp.ne.s32.totalorder %s85, %s99
      %p101 = scmp.eq.s32.totalorder %s19, 0
      %p102 = por %p100, %p101
      %s104 = sadd.s32 %s103, 1
      %p107 = scmp.eq.s32.totalorder %s13, 1
      %p108 = scmp.ne.s32.totalorder %s103, %s105
      %p109 = scmp.eq.s32.totalorder %s13, 0
      %p110 = por %p108, %p109
      %p111 = scmp.ne.s32.totalorder %s103, %s105
      %p112 = scmp.eq.s32.totalorder %s18, 1
      %p113 = por %p111, %p112
      %p114 = scmp.ne.s32.totalorder %s105, %s106
      %p115 = scmp.eq.s32.totalorder %s18, 0
      %p116 = por %p114, %p115
      %p117 = scmp.ne.s32.totalorder %s105, %s106
      %p118 = scmp.eq.s32.totalorder %s19, 1
      %p119 = por %p117, %p118
      %p121 = scmp.ne.s32.totalorder %s106, %s120
      %p122 = scmp.eq.s32.totalorder %s19, 0
      %p123 = por %p121, %p122
      %s124 = ssub.s32 %s20, %s32
      %s125 = ssub.s32 %s21, %s28
      %s126 = sor.u32 %s124, %s125
      %p127 = scmp.eq.s32.totalorder %s126, 0
      %s129 = sadd.s32 %s128, 1
      %s130 = scalar_select %p127, %s128, %s129
      %p133 = pneg %p127
      %p134 = scmp.eq.s32.totalorder %s13, 1
      %p135 = por %p133, %p134
      %p136 = scmp.ne.s32.totalorder %s128, %s131
      %p137 = scmp.eq.s32.totalorder %s13, 0
      %p138 = por %p136, %p137
      %p139 = scmp.ne.s32.totalorder %s128, %s131
      %p140 = scmp.eq.s32.totalorder %s18, 1
      %p141 = por %p139, %p140
      %p142 = scmp.ne.s32.totalorder %s131, %s132
      %p143 = scmp.eq.s32.totalorder %s18, 0
      %p144 = por %p142, %p143
      %p145 = scmp.ne.s32.totalorder %s131, %s132
      %p146 = scmp.eq.s32.totalorder %s19, 1
      %p147 = por %p145, %p146
      %p149 = scmp.ne.s32.totalorder %s132, %s148
      %p150 = scmp.eq.s32.totalorder %s19, 0
      %p151 = por %p149, %p150
      %p152 = scmp.le.s32.totalorder 1, %s13
      %p153 = scmp.lt.s32.totalorder %s13, 3
      %p154 = pnand %p152, %p153
      %p155 = pneg %p154
      // Predicated region
      $region9: #{tpu_custom_call.1} parent=5 // pred_check
        _
      $region10: #{tpu_custom_call.1} parent=5 // pred_check_branch
        %157 = sbr.rel (%p154) target = $region12
      $region11: #{tpu_custom_call.1} parent=5 // pred_region
        %s158 = ssub.s32 %s13, 1
        // Predicated region
        $region13: #{tpu_custom_call.1} parent=11 // pred_check
          %p159 = pneg %p74
        $region14: #{tpu_custom_call.1} parent=11 // pred_check_branch
          %161 = sbr.rel (%p159) target = $region16
        $region15: #{tpu_custom_call.1} parent=11 // pred_region
          _
        $region16: #{tpu_custom_call.1} parent=11 // pred_fallthru
          _
        // Predicated region
        $region17: #{tpu_custom_call.1} parent=11 // pred_check
          %p162 = pneg %p95
        $region18: #{tpu_custom_call.1} parent=11 // pred_check_branch
          %164 = sbr.rel (%p162) target = $region20
        $region19: #{tpu_custom_call.1} parent=11 // pred_region
          _
        $region20: #{tpu_custom_call.1} parent=11 // pred_fallthru
          _
        // Predicated region
        $region21: #{tpu_custom_call.1} parent=11 // pred_check
          %p165 = pneg %p116
        $region22: #{tpu_custom_call.1} parent=11 // pred_check_branch
          %167 = sbr.rel (%p165) target = $region24
        $region23: #{tpu_custom_call.1} parent=11 // pred_region
          _
        $region24: #{tpu_custom_call.1} parent=11 // pred_fallthru
          _
      $region12: #{tpu_custom_call.1} parent=5 // pred_fallthru
        _
      %p168 = scmp.lt.s32.totalorder %s13, 2
      // Predicated region
      $region25: #{tpu_custom_call.1} parent=5 // pred_check
        %p169 = pneg %p168
      $region26: #{tpu_custom_call.1} parent=5 // pred_check_branch
        %171 = sbr.rel (%p169) target = $region28
      $region27: #{tpu_custom_call.1} parent=5 // pred_region
        // Predicated region
        $region29: #{tpu_custom_call.1} parent=27 // pred_check
          %p172 = pneg %p47
        $region30: #{tpu_custom_call.1} parent=27 // pred_check_branch
          %174 = sbr.rel (%p172) target = $region32
        $region31: #{tpu_custom_call.1} parent=27 // pred_region
          %p175 = scmp.lt.s32.totalorder %s20, 1
          %s176 = scalar_select %p175, %s20, 1
          %p177 = scmp.lt.s32.totalorder %s21, 0
          %s178 = scalar_select %p177, %s21, 0
          %s179 = sadd.s32 %s178, %s176
          %s180 = smul.addr %s179, 8
          %s181 = scalar_lea.vmem %s0, %s180
        $region32: #{tpu_custom_call.1} parent=27 // pred_fallthru
          _
      $region28: #{tpu_custom_call.1} parent=5 // pred_fallthru
        _
      %p182 = scmp.le.s32.totalorder 1, %s13
      %p183 = scmp.lt.s32.totalorder %s13, 3
      %p184 = pnand %p182, %p183
      %p185 = pneg %p184
      // Predicated region
      $region33: #{tpu_custom_call.1} parent=5 // pred_check
        _
      $region34: #{tpu_custom_call.1} parent=5 // pred_check_branch
        %187 = sbr.rel (%p184) target = $region36
      $region35: #{tpu_custom_call.1} parent=5 // pred_region
        %s188 = ssub.s32 %s13, 1
        %p189 = scmp.lt.s32.totalorder %s22, 1
        %s190 = scalar_select %p189, %s22, 1
        %p191 = scmp.lt.s32.totalorder %s23, 0
        %s192 = scalar_select %p191, %s23, 0
        %s193 = sadd.s32 %s192, %s190
        %s194 = smul.addr %s193, 8
        %s195 = scalar_lea.vmem %s0, %s194
        %p196 = pneg %p53
        %p197 = pneg %p50
        %p198 = pneg %p74
        %p199 = pneg %p71
        %p200 = pneg %p95
        %p201 = pneg %p92
        %p202 = pneg %p116
        %p203 = pneg %p113
        %p204 = pneg %p144
        %p205 = pneg %p141
        %s206 = sand.u32 %s131, 1
        %s207 = scalar_lea.sflag [#allocation3], %s206
        %s208 = sand.u32 %s131, 1
        %s209 = smul.addr %s208, 8
        %s210 = scalar_lea.vmem [#allocation2], %s209
        %p211 = scmp.lt.s32.totalorder %s22, 1
        %s212 = scalar_select %p211, %s22, 1
        %p213 = scmp.lt.s32.totalorder %s23, 0
        %s214 = scalar_select %p213, %s23, 0
        %s215 = sadd.s32 %s214, %s212
        %s216 = smul.addr %s215, 8
        %s217 = scalar_lea.vmem %s0, %s216
        %v218 = vld [vmem:[%s217] sm:$0xff]
        %vm219 = vcmask 130048
        %v220 = vsel %vm219, %v218, 0.0
        %v221 = vrot.slane %v220, 4
        %v222 = vadd.f32 %v220, %v221
        %v223 = vrot.slane %v222, 2
        %v224 = vadd.f32 %v222, %v223
        %v225 = vrot.slane %v224, 1
        %v226 = vadd.f32 %v224, %v225
        %v227 = vrcp.pop 8.0
        %v228 = vmul.f32 %v226, %v227
        %v229 = vsub.f32 %v218, %v228
        %v230 = vmul.f32 %v229, %v229
        %v231 = vsel %vm219, %v230, 0.0
        %v232 = vrot.slane %v231, 4
        %v233 = vadd.f32 %v231, %v232
        %v234 = vrot.slane %v233, 2
        %v235 = vadd.f32 %v233, %v234
        %v236 = vrot.slane %v235, 1
        %v237 = vadd.f32 %v235, %v236
        %v238 = vmul.f32 %v237, %v227
        %v239 = vadd.f32 %v238, 1e-05
        %v240 = vrsqrt.pop %v239
        %v241 = vmul.f32 %v229, %v240
        %v242 = vld [vmem:[%s1] sm:$0xff]
        %244 = vset.pattern.permute.xlu0 0
        %245 = vperm.xlu0 %244, %v242
        %v246 = vpop.permute.xlu0 %245
        %v248 = vmul.f32 %v241, %v246
        %v249 = vld [vmem:[%s2] sm:$0xff]
        %v250 = vld [vmem:[%s3] sm:$0xff]
        %252 = vset.pattern.permute.xlu0 0
        %253 = vperm.xlu0 %252, %v250
        %v254 = vpop.permute.xlu0 %253
        %vm256 = vcmask 64512
        %v258 = vsel %vm256, %v249, 0
        %260 = vmatprep.subr.mxu0 0.0
        %261 = vmatpush1.msra.mxu0 %v248
        %262 = vmatprep.subr.mxu0 0.0
        %263 = vmatpush1.msra.mxu0 0.0
        %264 = vmatprep.subr.mxu0 0.0
        %265 = vmatpush1.msra.mxu0 0.0
        %266 = vmatprep.subr.mxu0 0.0
        %267 = vmatpush1.msra.mxu0 0.0
        %268 = vmatprep.subr.mxu0 0.0
        %269 = vmatpush1.msra.mxu0 0.0
        %270 = vmatprep.subr.mxu0 0.0
        %271 = vmatpush1.msra.mxu0 0.0
        %272 = vmatprep.subr.mxu0 0.0
        %273 = vmatpush1.msra.mxu0 0.0
        %274 = vmatprep.subr.mxu0 0.0
        %275 = vmatpush1.msra.mxu0 0.0
        %276 = vmatprep.subr.mxu0 0.0
        %277 = vmatpush1.msra.mxu0 0.0
        %278 = vmatprep.subr.mxu0 0.0
        %279 = vmatpush1.msra.mxu0 0.0
        %280 = vmatprep.subr.mxu0 0.0
        %281 = vmatpush1.msra.mxu0 0.0
        %282 = vmatprep.subr.mxu0 0.0
        %283 = vmatpush1.msra.mxu0 0.0
        %284 = vmatprep.subr.mxu0 0.0
        %285 = vmatpush1.msra.mxu0 0.0
        %286 = vmatprep.subr.mxu0 0.0
        %287 = vmatpush1.msra.mxu0 0.0
        %288 = vmatprep.subr.mxu0 0.0
        %289 = vmatpush1.msra.mxu0 0.0
        %290 = vmatprep.subr.mxu0 0.0
        %291 = vmatpush1.msra.mxu0 0.0
        %292 = vmatprep.subr.mxu0 0.0
        %293 = vmatpush1.msra.mxu0 0.0
        %294 = vmatprep.subr.mxu0 0.0
        %295 = vmatpush1.msra.mxu0 0.0
        %296 = vmatprep.subr.mxu0 0.0
        %297 = vmatpush1.msra.mxu0 0.0
        %298 = vmatprep.subr.mxu0 0.0
        %299 = vmatpush1.msra.mxu0 0.0
        %300 = vmatprep.subr.mxu0 0.0
        %301 = vmatpush1.msra.mxu0 0.0
        %302 = vmatprep.subr.mxu0 0.0
        %303 = vmatpush1.msra.mxu0 0.0
        %304 = vmatprep.subr.mxu0 0.0
        %305 = vmatpush1.msra.mxu0 0.0
        %306 = vmatprep.subr.mxu0 0.0
        %307 = vmatpush1.msra.mxu0 0.0
        %308 = vmatprep.subr.mxu0 0.0
        %309 = vmatpush1.msra.mxu0 0.0
        %310 = vmatprep.subr.mxu0 0.0
        %311 = vmatpush1.msra.mxu0 0.0
        %312 = vmatprep.subr.mxu0 0.0
        %313 = vmatpush1.msra.mxu0 0.0
        %314 = vmatprep.subr.mxu0 0.0
        %315 = vmatpush1.msra.mxu0 0.0
        %316 = vmatprep.subr.mxu0 0.0
        %317 = vmatpush1.msra.mxu0 0.0
        %318 = vmatprep.subr.mxu0 0.0
        %319 = vmatpush1.msra.mxu0 0.0
        %320 = vmatprep.subr.mxu0 0.0
        %321 = vmatpush1.msra.mxu0 0.0
        %322 = vmatprep.subr.mxu0 0.0
        %323 = vmatpush1.msra.mxu0 0.0
        %324 = vmatprep.mubr.f32.mxu0 0.0
        %325 = vmatmul.mubr.f32.gmra.mrb[0].mxu0 %v258
        %v326 = vpop.f32.mrb[0].mxu0
        %v327 = vadd.f32 %v254, %v326
        %v328 = vpop.f32.mrb[0].mxu0
        %329 = vdwg.mxu0
        %330 = vst.msk [vmem:[%s210] sm:$0xff] %vm219, %v327
        %s331 = sand.u32 %s131, 1
        %s332 = scalar_lea.sflag [#allocation3], %s331
        %s333 = sand.u32 %s131, 1
        %s334 = smul.addr %s333, 8
        %s335 = scalar_lea.vmem [#allocation2], %s334
        // Predicated region
        $region37: #{tpu_custom_call.1} parent=35 // pred_check
          %p336 = pneg %p141
        $region38: #{tpu_custom_call.1} parent=35 // pred_check_branch
          %338 = sbr.rel (%p336) target = $region40
        $region39: #{tpu_custom_call.1} parent=35 // pred_region
          %s340 = ssub.s32 128, 128
          %341 = vsyncadd %s332, %s340
          %s342 = sadd.s32 %s23, %s22
          %s343 = smul.addr %s342, 128
          %s344 = scalar_lea.hbm %s4, %s343
          %s346 = sshll.u32 %s335, 4
          %s347 = int_to_ptr.vmem [resolvable:$true] %s346
          %349 = dma.vmem_to_hbm [thread:$0]  %s347, 128, %s344, %s332
        $region40: #{tpu_custom_call.1} parent=35 // pred_fallthru
          _
      $region36: #{tpu_custom_call.1} parent=5 // pred_fallthru
        _
      %p350 = scmp.le.s32.totalorder 2, %s13
      // Predicated region
      $region41: #{tpu_custom_call.1} parent=5 // pred_check
        %p351 = pneg %p350
      $region42: #{tpu_custom_call.1} parent=5 // pred_check_branch
        %353 = sbr.rel (%p351) target = $region44
      $region43: #{tpu_custom_call.1} parent=5 // pred_region
        %s354 = ssub.s32 %s13, 2
        // Predicated region
        $region45: #{tpu_custom_call.1} parent=43 // pred_check
          %p355 = pneg %p147
        $region46: #{tpu_custom_call.1} parent=43 // pred_check_branch
          %357 = sbr.rel (%p355) target = $region48
        $region47: #{tpu_custom_call.1} parent=43 // pred_region
          %s358 = sand.u32 %s132, 1
          %s359 = scalar_lea.sflag [#allocation3], %s358
          %s360 = sand.u32 %s132, 1
          %s361 = smul.addr %s360, 8
          %s362 = scalar_lea.vmem [#allocation2], %s361
          %363 = dma.done %s359, 128
        $region48: #{tpu_custom_call.1} parent=43 // pred_fallthru
          _
      $region44: #{tpu_custom_call.1} parent=5 // pred_fallthru
        _
    $region6: #{tpu_custom_call.1} parent=1 // loop_footer
      %s17 = sadd.s32 1, %s13
    $region7: #{tpu_custom_call.1} parent=1 // loop_footer_branch
      %12 = sbr.rel target = $region3
    $region8: #{tpu_custom_call.1} parent=1 // loop_exit
      _
    %364 = vsyncpa [#allocation3], 1
    %s365 = scalar_lea.sflag [#allocation3], 1
    %366 = vsyncpa %s365, 1

</llo_original>
